<compile_context>
chip_gen: v7x
topology: tpu7x:2x2x1
jax: 0.10.0
libtpu: 0.0.40
codegen_flags: <defaults>
</compile_context>

<pallas_src>
import functools

import jax
import jax.numpy as jnp
from jax.experimental import pallas as pl
from jax.experimental.pallas import tpu as pltpu


def _disp_kernel(w_ref, b_ref, x_ref, o_ref, xpad_ref, *, H, W, C_in, C_out,
                 min_disp, max_disp):
    """One batch element per grid step.

    w_ref    : (C_out*C_in*9,)   conv weights, flattened OIHW (SMEM)
    b_ref    : (C_out,)          conv bias                     (SMEM)
    x_ref    : (1, C_in, H, W)   input tile, NCHW              (VMEM)
    o_ref    : (1, C_out, H, W)  output tile, NCHW             (VMEM)
    xpad_ref : (C_in, H+2, W+2)  zero-padded scratch           (VMEM)
    """
    # In-kernel zero padding (padding=1): zero the scratch, copy the interior.
    xpad_ref[...] = jnp.zeros_like(xpad_ref)
    xpad_ref[:, 1:H + 1, 1:W + 1] = x_ref[0].astype(jnp.float32)

    # 3x3 conv as shifted-window VPU FMAs (MXU would be ~1/128 utilized at
    # these channel counts).  Fully unrolled: 9 * C_in taps per output channel.
    for co in range(C_out):
        # Bias folded into the accumulator init (scalar read from SMEM).
        acc = jnp.full((H, W), b_ref[co], dtype=jnp.float32)
        for ci in range(C_in):
            for kh in range(3):
                for kw in range(3):
                    wv = w_ref[((co * C_in + ci) * 3 + kh) * 3 + kw]
                    acc = acc + xpad_ref[ci, kh:kh + H, kw:kw + W] * wv
        s = jax.nn.sigmoid(acc)                              # EUP (free slot)
        scaled_disp = min_disp + (max_disp - min_disp) * s   # disp_to_depth[0]
        o_ref[0, co, :, :] = scaled_disp.astype(o_ref.dtype)


def disp_forward(x_nchw, weight_oihw, bias, *, min_depth=0.1, max_depth=100.0):
    """JAX wrapper matching Disp.forward semantics.

    x_nchw      : (N, C_in, H, W)     float32
    weight_oihw : (C_out, C_in, 3, 3) float32   (PyTorch Conv2d layout)
    bias        : (C_out,)            float32
    returns     : (N, C_out, H, W)    float32
    """
    N, C_in, H, W = x_nchw.shape
    C_out = weight_oihw.shape[0]
    min_disp = 1.0 / max_depth
    max_disp = 1.0 / min_depth

    # Only glue: flatten the (tiny) weights/bias for SMEM; no transpose, no pad.
    w_flat = weight_oihw.reshape(-1).astype(jnp.float32)   # (C_out*C_in*9,)
    b_flat = bias.reshape(-1).astype(jnp.float32)          # (C_out,)

    kernel = functools.partial(
        _disp_kernel, H=H, W=W, C_in=C_in, C_out=C_out,
        min_disp=float(min_disp), max_disp=float(max_disp))

    out = pl.pallas_call(
        kernel,
        out_shape=jax.ShapeDtypeStruct((N, C_out, H, W), jnp.float32),
        grid_spec=pltpu.PrefetchScalarGridSpec(
            num_scalar_prefetch=0,
            grid=(N,),
            in_specs=[
                pl.BlockSpec(memory_space=pltpu.MemorySpace.SMEM),   # weights
                pl.BlockSpec(memory_space=pltpu.MemorySpace.SMEM),   # bias
                pl.BlockSpec((1, C_in, H, W), lambda n: (n, 0, 0, 0)),
            ],
            out_specs=pl.BlockSpec((1, C_out, H, W), lambda n: (n, 0, 0, 0)),
            scratch_shapes=[pltpu.VMEM((C_in, H + 2, W + 2), jnp.float32)],
        ),
        compiler_params=pltpu.CompilerParams(
            dimension_semantics=("parallel",)),
    )(w_flat, b_flat, x_nchw)

    return out


def _reference(x_nchw, weight_oihw, bias, min_depth=0.1, max_depth=100.0):
    """Pure-JAX reference (lax conv) for correctness checking."""
    y = jax.lax.conv_general_dilated(
        x_nchw, weight_oihw, window_strides=(1, 1), padding=((1, 1), (1, 1)),
        dimension_numbers=("NCHW", "OIHW", "NCHW"))
    y = y + bias.reshape(1, -1, 1, 1)
    s = jax.nn.sigmoid(y)
    min_disp = 1.0 / max_depth
    max_disp = 1.0 / min_depth
    return min_disp + (max_disp - min_disp) * s


if __name__ == "__main__":
    # Small shapes consistent with the module: batch=2, in_channels=4,
    # out_channels=1 (default), spatial 16x16.
    N, C_in, C_out, H, W = 2, 4, 1, 16, 16

    key = jax.random.PRNGKey(0)
    kx, kw, kb = jax.random.split(key, 3)

    x = jax.random.normal(kx, (N, C_in, H, W), dtype=jnp.float32)

    # Deterministic init mimicking torch Conv2d default (uniform +/- 1/sqrt(fan_in)).
    fan_in = C_in * 3 * 3
    bound = 1.0 / (fan_in ** 0.5)
    weight = jax.random.uniform(kw, (C_out, C_in, 3, 3),
                                minval=-bound, maxval=bound, dtype=jnp.float32)
    bias = jax.random.uniform(kb, (C_out,),
                              minval=-bound, maxval=bound, dtype=jnp.float32)

    out = disp_forward(x, weight, bias)
    out = jax.block_until_ready(out)

    ref = jax.block_until_ready(_reference(x, weight, bias))
    assert out.shape == (N, C_out, H, W)
    assert jnp.allclose(out, ref, atol=1e-5, rtol=1e-5), "mismatch vs reference"

    print("KERNEL_OK")
</pallas_src>

<mosaic_0001>
module attributes {stable_mosaic.version = 11 : i64} {
  func.func @_disp_kernel(%arg0: i32, %arg1: memref<36xf32, #tpu.memory_space<smem>>, %arg2: memref<1xf32, #tpu.memory_space<smem>>, %arg3: memref<1x4x16x16xf32, #tpu.memory_space<vmem>>, %arg4: memref<1x1x16x16xf32, #tpu.memory_space<vmem>>, %arg5: memref<4x18x18xf32, #tpu.memory_space<vmem>>) attributes {dimension_semantics = [#tpu.dimension_semantics<parallel>], iteration_bounds = array<i64: 2>, scalar_prefetch = 0 : i64, scratch_operands = 1 : i64, tpu.core_type = #tpu.core_type<tc>, window_params = [{transform_indices = @transform_0, window_bounds = array<i64: 36>}, {transform_indices = @transform_1, window_bounds = array<i64: 1>}, {transform_indices = @transform_2, window_bounds = array<i64: 1, 4, 16, 16>}, {transform_indices = @transform_3, window_bounds = array<i64: 1, 1, 16, 16>}]} {
    %cst = arith.constant 0.000000e+00 : f32
    %0 = vector.broadcast %cst : f32 to vector<4x18x18xf32>
    %c0 = arith.constant 0 : index
    %c0_0 = arith.constant 0 : index
    %c0_1 = arith.constant 0 : index
    %1 = vector.load %arg5[%c0, %c0_0, %c0_1] : memref<4x18x18xf32, #tpu.memory_space<vmem>>, vector<4x18x18xf32>
    tpu.vector_store %arg5[%c0, %c0_0, %c0_1], %0 {strides = array<i32>} : memref<4x18x18xf32, #tpu.memory_space<vmem>>, vector<4x18x18xf32>,
    %c0_2 = arith.constant 0 : index
    %c0_3 = arith.constant 0 : index
    %c0_4 = arith.constant 0 : index
    %c0_5 = arith.constant 0 : index
    %2 = vector.load %arg3[%c0_2, %c0_3, %c0_4, %c0_5] : memref<1x4x16x16xf32, #tpu.memory_space<vmem>>, vector<1x4x16x16xf32>
    %3 = vector.shape_cast %2 : vector<1x4x16x16xf32> to vector<4x16x16xf32>
    %c0_6 = arith.constant 0 : index
    %c1 = arith.constant 1 : index
    %c1_7 = arith.constant 1 : index
    %4 = vector.load %arg5[%c0_6, %c1, %c1_7] : memref<4x18x18xf32, #tpu.memory_space<vmem>>, vector<4x16x16xf32>
    tpu.vector_store %arg5[%c0_6, %c1, %c1_7], %3 {strides = array<i32>} : memref<4x18x18xf32, #tpu.memory_space<vmem>>, vector<4x16x16xf32>,
    %c0_8 = arith.constant 0 : index
    %5 = memref.load %arg2[%c0_8] : memref<1xf32, #tpu.memory_space<smem>>
    %6 = vector.broadcast %5 : f32 to vector<16x16xf32>
    %c0_9 = arith.constant 0 : index
    %7 = memref.load %arg1[%c0_9] : memref<36xf32, #tpu.memory_space<smem>>
    %c0_10 = arith.constant 0 : index
    %c0_11 = arith.constant 0 : index
    %c0_12 = arith.constant 0 : index
    %8 = vector.load %arg5[%c0_10, %c0_11, %c0_12] : memref<4x18x18xf32, #tpu.memory_space<vmem>>, vector<1x16x16xf32>
    %9 = vector.shape_cast %8 : vector<1x16x16xf32> to vector<16x16xf32>
    %10 = vector.broadcast %7 : f32 to vector<16x16xf32>
    %11 = arith.mulf %9, %10 : vector<16x16xf32>
    %12 = arith.addf %6, %11 : vector<16x16xf32>
    %c1_13 = arith.constant 1 : index
    %13 = memref.load %arg1[%c1_13] : memref<36xf32, #tpu.memory_space<smem>>
    %c0_14 = arith.constant 0 : index
    %c0_15 = arith.constant 0 : index
    %c1_16 = arith.constant 1 : index
    %14 = vector.load %arg5[%c0_14, %c0_15, %c1_16] : memref<4x18x18xf32, #tpu.memory_space<vmem>>, vector<1x16x16xf32>
    %15 = vector.shape_cast %14 : vector<1x16x16xf32> to vector<16x16xf32>
    %16 = vector.broadcast %13 : f32 to vector<16x16xf32>
    %17 = arith.mulf %15, %16 : vector<16x16xf32>
    %18 = arith.addf %12, %17 : vector<16x16xf32>
    %c2 = arith.constant 2 : index
    %19 = memref.load %arg1[%c2] : memref<36xf32, #tpu.memory_space<smem>>
    %c0_17 = arith.constant 0 : index
    %c0_18 = arith.constant 0 : index
    %c2_19 = arith.constant 2 : index
    %20 = vector.load %arg5[%c0_17, %c0_18, %c2_19] : memref<4x18x18xf32, #tpu.memory_space<vmem>>, vector<1x16x16xf32>
    %21 = vector.shape_cast %20 : vector<1x16x16xf32> to vector<16x16xf32>
    %22 = vector.broadcast %19 : f32 to vector<16x16xf32>
    %23 = arith.mulf %21, %22 : vector<16x16xf32>
    %24 = arith.addf %18, %23 : vector<16x16xf32>
    %c3 = arith.constant 3 : index
    %25 = memref.load %arg1[%c3] : memref<36xf32, #tpu.memory_space<smem>>
    %c0_20 = arith.constant 0 : index
    %c1_21 = arith.constant 1 : index
    %c0_22 = arith.constant 0 : index
    %26 = vector.load %arg5[%c0_20, %c1_21, %c0_22] : memref<4x18x18xf32, #tpu.memory_space<vmem>>, vector<1x16x16xf32>
    %27 = vector.shape_cast %26 : vector<1x16x16xf32> to vector<16x16xf32>
    %28 = vector.broadcast %25 : f32 to vector<16x16xf32>
    %29 = arith.mulf %27, %28 : vector<16x16xf32>
    %30 = arith.addf %24, %29 : vector<16x16xf32>
    %c4 = arith.constant 4 : index
    %31 = memref.load %arg1[%c4] : memref<36xf32, #tpu.memory_space<smem>>
    %c0_23 = arith.constant 0 : index
    %c1_24 = arith.constant 1 : index
    %c1_25 = arith.constant 1 : index
    %32 = vector.load %arg5[%c0_23, %c1_24, %c1_25] : memref<4x18x18xf32, #tpu.memory_space<vmem>>, vector<1x16x16xf32>
    %33 = vector.shape_cast %32 : vector<1x16x16xf32> to vector<16x16xf32>
    %34 = vector.broadcast %31 : f32 to vector<16x16xf32>
    %35 = arith.mulf %33, %34 : vector<16x16xf32>
    %36 = arith.addf %30, %35 : vector<16x16xf32>
    %c5 = arith.constant 5 : index
    %37 = memref.load %arg1[%c5] : memref<36xf32, #tpu.memory_space<smem>>
    %c0_26 = arith.constant 0 : index
    %c1_27 = arith.constant 1 : index
    %c2_28 = arith.constant 2 : index
    %38 = vector.load %arg5[%c0_26, %c1_27, %c2_28] : memref<4x18x18xf32, #tpu.memory_space<vmem>>, vector<1x16x16xf32>
    %39 = vector.shape_cast %38 : vector<1x16x16xf32> to vector<16x16xf32>
    %40 = vector.broadcast %37 : f32 to vector<16x16xf32>
    %41 = arith.mulf %39, %40 : vector<16x16xf32>
    %42 = arith.addf %36, %41 : vector<16x16xf32>
    %c6 = arith.constant 6 : index
    %43 = memref.load %arg1[%c6] : memref<36xf32, #tpu.memory_space<smem>>
    %c0_29 = arith.constant 0 : index
    %c2_30 = arith.constant 2 : index
    %c0_31 = arith.constant 0 : index
    %44 = vector.load %arg5[%c0_29, %c2_30, %c0_31] : memref<4x18x18xf32, #tpu.memory_space<vmem>>, vector<1x16x16xf32>
    %45 = vector.shape_cast %44 : vector<1x16x16xf32> to vector<16x16xf32>
    %46 = vector.broadcast %43 : f32 to vector<16x16xf32>
    %47 = arith.mulf %45, %46 : vector<16x16xf32>
    %48 = arith.addf %42, %47 : vector<16x16xf32>
    %c7 = arith.constant 7 : index
    %49 = memref.load %arg1[%c7] : memref<36xf32, #tpu.memory_space<smem>>
    %c0_32 = arith.constant 0 : index
    %c2_33 = arith.constant 2 : index
    %c1_34 = arith.constant 1 : index
    %50 = vector.load %arg5[%c0_32, %c2_33, %c1_34] : memref<4x18x18xf32, #tpu.memory_space<vmem>>, vector<1x16x16xf32>
    %51 = vector.shape_cast %50 : vector<1x16x16xf32> to vector<16x16xf32>
    %52 = vector.broadcast %49 : f32 to vector<16x16xf32>
    %53 = arith.mulf %51, %52 : vector<16x16xf32>
    %54 = arith.addf %48, %53 : vector<16x16xf32>
    %c8 = arith.constant 8 : index
    %55 = memref.load %arg1[%c8] : memref<36xf32, #tpu.memory_space<smem>>
    %c0_35 = arith.constant 0 : index
    %c2_36 = arith.constant 2 : index
    %c2_37 = arith.constant 2 : index
    %56 = vector.load %arg5[%c0_35, %c2_36, %c2_37] : memref<4x18x18xf32, #tpu.memory_space<vmem>>, vector<1x16x16xf32>
    %57 = vector.shape_cast %56 : vector<1x16x16xf32> to vector<16x16xf32>
    %58 = vector.broadcast %55 : f32 to vector<16x16xf32>
    %59 = arith.mulf %57, %58 : vector<16x16xf32>
    %60 = arith.addf %54, %59 : vector<16x16xf32>
    %c9 = arith.constant 9 : index
    %61 = memref.load %arg1[%c9] : memref<36xf32, #tpu.memory_space<smem>>
    %c1_38 = arith.constant 1 : index
    %c0_39 = arith.constant 0 : index
    %c0_40 = arith.constant 0 : index
    %62 = vector.load %arg5[%c1_38, %c0_39, %c0_40] : memref<4x18x18xf32, #tpu.memory_space<vmem>>, vector<1x16x16xf32>
    %63 = vector.shape_cast %62 : vector<1x16x16xf32> to vector<16x16xf32>
    %64 = vector.broadcast %61 : f32 to vector<16x16xf32>
    %65 = arith.mulf %63, %64 : vector<16x16xf32>
    %66 = arith.addf %60, %65 : vector<16x16xf32>
    %c10 = arith.constant 10 : index
    %67 = memref.load %arg1[%c10] : memref<36xf32, #tpu.memory_space<smem>>
    %c1_41 = arith.constant 1 : index
    %c0_42 = arith.constant 0 : index
    %c1_43 = arith.constant 1 : index
    %68 = vector.load %arg5[%c1_41, %c0_42, %c1_43] : memref<4x18x18xf32, #tpu.memory_space<vmem>>, vector<1x16x16xf32>
    %69 = vector.shape_cast %68 : vector<1x16x16xf32> to vector<16x16xf32>
    %70 = vector.broadcast %67 : f32 to vector<16x16xf32>
    %71 = arith.mulf %69, %70 : vector<16x16xf32>
    %72 = arith.addf %66, %71 : vector<16x16xf32>
    %c11 = arith.constant 11 : index
    %73 = memref.load %arg1[%c11] : memref<36xf32, #tpu.memory_space<smem>>
    %c1_44 = arith.constant 1 : index
    %c0_45 = arith.constant 0 : index
    %c2_46 = arith.constant 2 : index
    %74 = vector.load %arg5[%c1_44, %c0_45, %c2_46] : memref<4x18x18xf32, #tpu.memory_space<vmem>>, vector<1x16x16xf32>
    %75 = vector.shape_cast %74 : vector<1x16x16xf32> to vector<16x16xf32>
    %76 = vector.broadcast %73 : f32 to vector<16x16xf32>
    %77 = arith.mulf %75, %76 : vector<16x16xf32>
    %78 = arith.addf %72, %77 : vector<16x16xf32>
    %c12 = arith.constant 12 : index
    %79 = memref.load %arg1[%c12] : memref<36xf32, #tpu.memory_space<smem>>
    %c1_47 = arith.constant 1 : index
    %c1_48 = arith.constant 1 : index
    %c0_49 = arith.constant 0 : index
    %80 = vector.load %arg5[%c1_47, %c1_48, %c0_49] : memref<4x18x18xf32, #tpu.memory_space<vmem>>, vector<1x16x16xf32>
    %81 = vector.shape_cast %80 : vector<1x16x16xf32> to vector<16x16xf32>
    %82 = vector.broadcast %79 : f32 to vector<16x16xf32>
    %83 = arith.mulf %81, %82 : vector<16x16xf32>
    %84 = arith.addf %78, %83 : vector<16x16xf32>
    %c13 = arith.constant 13 : index
    %85 = memref.load %arg1[%c13] : memref<36xf32, #tpu.memory_space<smem>>
    %c1_50 = arith.constant 1 : index
    %c1_51 = arith.constant 1 : index
    %c1_52 = arith.constant 1 : index
    %86 = vector.load %arg5[%c1_50, %c1_51, %c1_52] : memref<4x18x18xf32, #tpu.memory_space<vmem>>, vector<1x16x16xf32>
    %87 = vector.shape_cast %86 : vector<1x16x16xf32> to vector<16x16xf32>
    %88 = vector.broadcast %85 : f32 to vector<16x16xf32>
    %89 = arith.mulf %87, %88 : vector<16x16xf32>
    %90 = arith.addf %84, %89 : vector<16x16xf32>
    %c14 = arith.constant 14 : index
    %91 = memref.load %arg1[%c14] : memref<36xf32, #tpu.memory_space<smem>>
    %c1_53 = arith.constant 1 : index
    %c1_54 = arith.constant 1 : index
    %c2_55 = arith.constant 2 : index
    %92 = vector.load %arg5[%c1_53, %c1_54, %c2_55] : memref<4x18x18xf32, #tpu.memory_space<vmem>>, vector<1x16x16xf32>
    %93 = vector.shape_cast %92 : vector<1x16x16xf32> to vector<16x16xf32>
    %94 = vector.broadcast %91 : f32 to vector<16x16xf32>
    %95 = arith.mulf %93, %94 : vector<16x16xf32>
    %96 = arith.addf %90, %95 : vector<16x16xf32>
    %c15 = arith.constant 15 : index
    %97 = memref.load %arg1[%c15] : memref<36xf32, #tpu.memory_space<smem>>
    %c1_56 = arith.constant 1 : index
    %c2_57 = arith.constant 2 : index
    %c0_58 = arith.constant 0 : index
    %98 = vector.load %arg5[%c1_56, %c2_57, %c0_58] : memref<4x18x18xf32, #tpu.memory_space<vmem>>, vector<1x16x16xf32>
    %99 = vector.shape_cast %98 : vector<1x16x16xf32> to vector<16x16xf32>
    %100 = vector.broadcast %97 : f32 to vector<16x16xf32>
    %101 = arith.mulf %99, %100 : vector<16x16xf32>
    %102 = arith.addf %96, %101 : vector<16x16xf32>
    %c16 = arith.constant 16 : index
    %103 = memref.load %arg1[%c16] : memref<36xf32, #tpu.memory_space<smem>>
    %c1_59 = arith.constant 1 : index
    %c2_60 = arith.constant 2 : index
    %c1_61 = arith.constant 1 : index
    %104 = vector.load %arg5[%c1_59, %c2_60, %c1_61] : memref<4x18x18xf32, #tpu.memory_space<vmem>>, vector<1x16x16xf32>
    %105 = vector.shape_cast %104 : vector<1x16x16xf32> to vector<16x16xf32>
    %106 = vector.broadcast %103 : f32 to vector<16x16xf32>
    %107 = arith.mulf %105, %106 : vector<16x16xf32>
    %108 = arith.addf %102, %107 : vector<16x16xf32>
    %c17 = arith.constant 17 : index
    %109 = memref.load %arg1[%c17] : memref<36xf32, #tpu.memory_space<smem>>
    %c1_62 = arith.constant 1 : index
    %c2_63 = arith.constant 2 : index
    %c2_64 = arith.constant 2 : index
    %110 = vector.load %arg5[%c1_62, %c2_63, %c2_64] : memref<4x18x18xf32, #tpu.memory_space<vmem>>, vector<1x16x16xf32>
    %111 = vector.shape_cast %110 : vector<1x16x16xf32> to vector<16x16xf32>
    %112 = vector.broadcast %109 : f32 to vector<16x16xf32>
    %113 = arith.mulf %111, %112 : vector<16x16xf32>
    %114 = arith.addf %108, %113 : vector<16x16xf32>
    %c18 = arith.constant 18 : index
    %115 = memref.load %arg1[%c18] : memref<36xf32, #tpu.memory_space<smem>>
    %c2_65 = arith.constant 2 : index
    %c0_66 = arith.constant 0 : index
    %c0_67 = arith.constant 0 : index
    %116 = vector.load %arg5[%c2_65, %c0_66, %c0_67] : memref<4x18x18xf32, #tpu.memory_space<vmem>>, vector<1x16x16xf32>
    %117 = vector.shape_cast %116 : vector<1x16x16xf32> to vector<16x16xf32>
    %118 = vector.broadcast %115 : f32 to vector<16x16xf32>
    %119 = arith.mulf %117, %118 : vector<16x16xf32>
    %120 = arith.addf %114, %119 : vector<16x16xf32>
    %c19 = arith.constant 19 : index
    %121 = memref.load %arg1[%c19] : memref<36xf32, #tpu.memory_space<smem>>
    %c2_68 = arith.constant 2 : index
    %c0_69 = arith.constant 0 : index
    %c1_70 = arith.constant 1 : index
    %122 = vector.load %arg5[%c2_68, %c0_69, %c1_70] : memref<4x18x18xf32, #tpu.memory_space<vmem>>, vector<1x16x16xf32>
    %123 = vector.shape_cast %122 : vector<1x16x16xf32> to vector<16x16xf32>
    %124 = vector.broadcast %121 : f32 to vector<16x16xf32>
    %125 = arith.mulf %123, %124 : vector<16x16xf32>
    %126 = arith.addf %120, %125 : vector<16x16xf32>
    %c20 = arith.constant 20 : index
    %127 = memref.load %arg1[%c20] : memref<36xf32, #tpu.memory_space<smem>>
    %c2_71 = arith.constant 2 : index
    %c0_72 = arith.constant 0 : index
    %c2_73 = arith.constant 2 : index
    %128 = vector.load %arg5[%c2_71, %c0_72, %c2_73] : memref<4x18x18xf32, #tpu.memory_space<vmem>>, vector<1x16x16xf32>
    %129 = vector.shape_cast %128 : vector<1x16x16xf32> to vector<16x16xf32>
    %130 = vector.broadcast %127 : f32 to vector<16x16xf32>
    %131 = arith.mulf %129, %130 : vector<16x16xf32>
    %132 = arith.addf %126, %131 : vector<16x16xf32>
    %c21 = arith.constant 21 : index
    %133 = memref.load %arg1[%c21] : memref<36xf32, #tpu.memory_space<smem>>
    %c2_74 = arith.constant 2 : index
    %c1_75 = arith.constant 1 : index
    %c0_76 = arith.constant 0 : index
    %134 = vector.load %arg5[%c2_74, %c1_75, %c0_76] : memref<4x18x18xf32, #tpu.memory_space<vmem>>, vector<1x16x16xf32>
    %135 = vector.shape_cast %134 : vector<1x16x16xf32> to vector<16x16xf32>
    %136 = vector.broadcast %133 : f32 to vector<16x16xf32>
    %137 = arith.mulf %135, %136 : vector<16x16xf32>
    %138 = arith.addf %132, %137 : vector<16x16xf32>
    %c22 = arith.constant 22 : index
    %139 = memref.load %arg1[%c22] : memref<36xf32, #tpu.memory_space<smem>>
    %c2_77 = arith.constant 2 : index
    %c1_78 = arith.constant 1 : index
    %c1_79 = arith.constant 1 : index
    %140 = vector.load %arg5[%c2_77, %c1_78, %c1_79] : memref<4x18x18xf32, #tpu.memory_space<vmem>>, vector<1x16x16xf32>
    %141 = vector.shape_cast %140 : vector<1x16x16xf32> to vector<16x16xf32>
    %142 = vector.broadcast %139 : f32 to vector<16x16xf32>
    %143 = arith.mulf %141, %142 : vector<16x16xf32>
    %144 = arith.addf %138, %143 : vector<16x16xf32>
    %c23 = arith.constant 23 : index
    %145 = memref.load %arg1[%c23] : memref<36xf32, #tpu.memory_space<smem>>
    %c2_80 = arith.constant 2 : index
    %c1_81 = arith.constant 1 : index
    %c2_82 = arith.constant 2 : index
    %146 = vector.load %arg5[%c2_80, %c1_81, %c2_82] : memref<4x18x18xf32, #tpu.memory_space<vmem>>, vector<1x16x16xf32>
    %147 = vector.shape_cast %146 : vector<1x16x16xf32> to vector<16x16xf32>
    %148 = vector.broadcast %145 : f32 to vector<16x16xf32>
    %149 = arith.mulf %147, %148 : vector<16x16xf32>
    %150 = arith.addf %144, %149 : vector<16x16xf32>
    %c24 = arith.constant 24 : index
    %151 = memref.load %arg1[%c24] : memref<36xf32, #tpu.memory_space<smem>>
    %c2_83 = arith.constant 2 : index
    %c2_84 = arith.constant 2 : index
    %c0_85 = arith.constant 0 : index
    %152 = vector.load %arg5[%c2_83, %c2_84, %c0_85] : memref<4x18x18xf32, #tpu.memory_space<vmem>>, vector<1x16x16xf32>
    %153 = vector.shape_cast %152 : vector<1x16x16xf32> to vector<16x16xf32>
    %154 = vector.broadcast %151 : f32 to vector<16x16xf32>
    %155 = arith.mulf %153, %154 : vector<16x16xf32>
    %156 = arith.addf %150, %155 : vector<16x16xf32>
    %c25 = arith.constant 25 : index
    %157 = memref.load %arg1[%c25] : memref<36xf32, #tpu.memory_space<smem>>
    %c2_86 = arith.constant 2 : index
    %c2_87 = arith.constant 2 : index
    %c1_88 = arith.constant 1 : index
    %158 = vector.load %arg5[%c2_86, %c2_87, %c1_88] : memref<4x18x18xf32, #tpu.memory_space<vmem>>, vector<1x16x16xf32>
    %159 = vector.shape_cast %158 : vector<1x16x16xf32> to vector<16x16xf32>
    %160 = vector.broadcast %157 : f32 to vector<16x16xf32>
    %161 = arith.mulf %159, %160 : vector<16x16xf32>
    %162 = arith.addf %156, %161 : vector<16x16xf32>
    %c26 = arith.constant 26 : index
    %163 = memref.load %arg1[%c26] : memref<36xf32, #tpu.memory_space<smem>>
    %c2_89 = arith.constant 2 : index
    %c2_90 = arith.constant 2 : index
    %c2_91 = arith.constant 2 : index
    %164 = vector.load %arg5[%c2_89, %c2_90, %c2_91] : memref<4x18x18xf32, #tpu.memory_space<vmem>>, vector<1x16x16xf32>
    %165 = vector.shape_cast %164 : vector<1x16x16xf32> to vector<16x16xf32>
    %166 = vector.broadcast %163 : f32 to vector<16x16xf32>
    %167 = arith.mulf %165, %166 : vector<16x16xf32>
    %168 = arith.addf %162, %167 : vector<16x16xf32>
    %c27 = arith.constant 27 : index
    %169 = memref.load %arg1[%c27] : memref<36xf32, #tpu.memory_space<smem>>
    %c3_92 = arith.constant 3 : index
    %c0_93 = arith.constant 0 : index
    %c0_94 = arith.constant 0 : index
    %170 = vector.load %arg5[%c3_92, %c0_93, %c0_94] : memref<4x18x18xf32, #tpu.memory_space<vmem>>, vector<1x16x16xf32>
    %171 = vector.shape_cast %170 : vector<1x16x16xf32> to vector<16x16xf32>
    %172 = vector.broadcast %169 : f32 to vector<16x16xf32>
    %173 = arith.mulf %171, %172 : vector<16x16xf32>
    %174 = arith.addf %168, %173 : vector<16x16xf32>
    %c28 = arith.constant 28 : index
    %175 = memref.load %arg1[%c28] : memref<36xf32, #tpu.memory_space<smem>>
    %c3_95 = arith.constant 3 : index
    %c0_96 = arith.constant 0 : index
    %c1_97 = arith.constant 1 : index
    %176 = vector.load %arg5[%c3_95, %c0_96, %c1_97] : memref<4x18x18xf32, #tpu.memory_space<vmem>>, vector<1x16x16xf32>
    %177 = vector.shape_cast %176 : vector<1x16x16xf32> to vector<16x16xf32>
    %178 = vector.broadcast %175 : f32 to vector<16x16xf32>
    %179 = arith.mulf %177, %178 : vector<16x16xf32>
    %180 = arith.addf %174, %179 : vector<16x16xf32>
    %c29 = arith.constant 29 : index
    %181 = memref.load %arg1[%c29] : memref<36xf32, #tpu.memory_space<smem>>
    %c3_98 = arith.constant 3 : index
    %c0_99 = arith.constant 0 : index
    %c2_100 = arith.constant 2 : index
    %182 = vector.load %arg5[%c3_98, %c0_99, %c2_100] : memref<4x18x18xf32, #tpu.memory_space<vmem>>, vector<1x16x16xf32>
    %183 = vector.shape_cast %182 : vector<1x16x16xf32> to vector<16x16xf32>
    %184 = vector.broadcast %181 : f32 to vector<16x16xf32>
    %185 = arith.mulf %183, %184 : vector<16x16xf32>
    %186 = arith.addf %180, %185 : vector<16x16xf32>
    %c30 = arith.constant 30 : index
    %187 = memref.load %arg1[%c30] : memref<36xf32, #tpu.memory_space<smem>>
    %c3_101 = arith.constant 3 : index
    %c1_102 = arith.constant 1 : index
    %c0_103 = arith.constant 0 : index
    %188 = vector.load %arg5[%c3_101, %c1_102, %c0_103] : memref<4x18x18xf32, #tpu.memory_space<vmem>>, vector<1x16x16xf32>
    %189 = vector.shape_cast %188 : vector<1x16x16xf32> to vector<16x16xf32>
    %190 = vector.broadcast %187 : f32 to vector<16x16xf32>
    %191 = arith.mulf %189, %190 : vector<16x16xf32>
    %192 = arith.addf %186, %191 : vector<16x16xf32>
    %c31 = arith.constant 31 : index
    %193 = memref.load %arg1[%c31] : memref<36xf32, #tpu.memory_space<smem>>
    %c3_104 = arith.constant 3 : index
    %c1_105 = arith.constant 1 : index
    %c1_106 = arith.constant 1 : index
    %194 = vector.load %arg5[%c3_104, %c1_105, %c1_106] : memref<4x18x18xf32, #tpu.memory_space<vmem>>, vector<1x16x16xf32>
    %195 = vector.shape_cast %194 : vector<1x16x16xf32> to vector<16x16xf32>
    %196 = vector.broadcast %193 : f32 to vector<16x16xf32>
    %197 = arith.mulf %195, %196 : vector<16x16xf32>
    %198 = arith.addf %192, %197 : vector<16x16xf32>
    %c32 = arith.constant 32 : index
    %199 = memref.load %arg1[%c32] : memref<36xf32, #tpu.memory_space<smem>>
    %c3_107 = arith.constant 3 : index
    %c1_108 = arith.constant 1 : index
    %c2_109 = arith.constant 2 : index
    %200 = vector.load %arg5[%c3_107, %c1_108, %c2_109] : memref<4x18x18xf32, #tpu.memory_space<vmem>>, vector<1x16x16xf32>
    %201 = vector.shape_cast %200 : vector<1x16x16xf32> to vector<16x16xf32>
    %202 = vector.broadcast %199 : f32 to vector<16x16xf32>
    %203 = arith.mulf %201, %202 : vector<16x16xf32>
    %204 = arith.addf %198, %203 : vector<16x16xf32>
    %c33 = arith.constant 33 : index
    %205 = memref.load %arg1[%c33] : memref<36xf32, #tpu.memory_space<smem>>
    %c3_110 = arith.constant 3 : index
    %c2_111 = arith.constant 2 : index
    %c0_112 = arith.constant 0 : index
    %206 = vector.load %arg5[%c3_110, %c2_111, %c0_112] : memref<4x18x18xf32, #tpu.memory_space<vmem>>, vector<1x16x16xf32>
    %207 = vector.shape_cast %206 : vector<1x16x16xf32> to vector<16x16xf32>
    %208 = vector.broadcast %205 : f32 to vector<16x16xf32>
    %209 = arith.mulf %207, %208 : vector<16x16xf32>
    %210 = arith.addf %204, %209 : vector<16x16xf32>
    %c34 = arith.constant 34 : index
    %211 = memref.load %arg1[%c34] : memref<36xf32, #tpu.memory_space<smem>>
    %c3_113 = arith.constant 3 : index
    %c2_114 = arith.constant 2 : index
    %c1_115 = arith.constant 1 : index
    %212 = vector.load %arg5[%c3_113, %c2_114, %c1_115] : memref<4x18x18xf32, #tpu.memory_space<vmem>>, vector<1x16x16xf32>
    %213 = vector.shape_cast %212 : vector<1x16x16xf32> to vector<16x16xf32>
    %214 = vector.broadcast %211 : f32 to vector<16x16xf32>
    %215 = arith.mulf %213, %214 : vector<16x16xf32>
    %216 = arith.addf %210, %215 : vector<16x16xf32>
    %c35 = arith.constant 35 : index
    %217 = memref.load %arg1[%c35] : memref<36xf32, #tpu.memory_space<smem>>
    %c3_116 = arith.constant 3 : index
    %c2_117 = arith.constant 2 : index
    %c2_118 = arith.constant 2 : index
    %218 = vector.load %arg5[%c3_116, %c2_117, %c2_118] : memref<4x18x18xf32, #tpu.memory_space<vmem>>, vector<1x16x16xf32>
    %219 = vector.shape_cast %218 : vector<1x16x16xf32> to vector<16x16xf32>
    %220 = vector.broadcast %217 : f32 to vector<16x16xf32>
    %221 = arith.mulf %219, %220 : vector<16x16xf32>
    %222 = arith.addf %216, %221 : vector<16x16xf32>
    %223 = arith.negf %222 : vector<16x16xf32>
    %224 = math.exp %223 : vector<16x16xf32>
    %cst_119 = arith.constant 1.000000e+00 : f32
    %225 = vector.broadcast %cst_119 : f32 to vector<16x16xf32>
    %226 = arith.addf %225, %224 : vector<16x16xf32>
    %227 = arith.divf %225, %226 : vector<16x16xf32>
    %cst_120 = arith.constant 9.98999977 : f32
    %228 = vector.broadcast %cst_120 : f32 to vector<16x16xf32>
    %229 = arith.mulf %228, %227 : vector<16x16xf32>
    %cst_121 = arith.constant 0.00999999977 : f32
    %230 = vector.broadcast %cst_121 : f32 to vector<16x16xf32>
    %231 = arith.addf %230, %229 : vector<16x16xf32>
    %c0_122 = arith.constant 0 : index
    %c0_123 = arith.constant 0 : index
    %c0_124 = arith.constant 0 : index
    %c0_125 = arith.constant 0 : index
    %232 = vector.load %arg4[%c0_122, %c0_123, %c0_124, %c0_125] : memref<1x1x16x16xf32, #tpu.memory_space<vmem>>, vector<1x1x16x16xf32>
    %233 = vector.shape_cast %232 : vector<1x1x16x16xf32> to vector<16x16xf32>
    %234 = vector.shape_cast %231 : vector<16x16xf32> to vector<1x1x16x16xf32>
    tpu.vector_store %arg4[%c0_122, %c0_123, %c0_124, %c0_125], %234 {strides = array<i32>} : memref<1x1x16x16xf32, #tpu.memory_space<vmem>>, vector<1x1x16x16xf32>,
    return
  }
  func.func @transform_0(%arg0: i32) -> i32 {
    %c0_i32 = arith.constant 0 : i32
    %c0_i32_0 = arith.constant 0 : i32
    return %c0_i32 : i32
  }
  func.func @transform_1(%arg0: i32) -> i32 {
    %c0_i32 = arith.constant 0 : i32
    %c0_i32_0 = arith.constant 0 : i32
    return %c0_i32 : i32
  }
  func.func @transform_2(%arg0: i32) -> (i32, i32, i32, i32) {
    %c0_i32 = arith.constant 0 : i32
    %c0_i32_0 = arith.constant 0 : i32
    %c0_i32_1 = arith.constant 0 : i32
    %c0_i32_2 = arith.constant 0 : i32
    return %arg0, %c0_i32, %c0_i32_0, %c0_i32_1 : i32, i32, i32, i32
  }
  func.func @transform_3(%arg0: i32) -> (i32, i32, i32, i32) {
    %c0_i32 = arith.constant 0 : i32
    %c0_i32_0 = arith.constant 0 : i32
    %c0_i32_1 = arith.constant 0 : i32
    %c0_i32_2 = arith.constant 0 : i32
    return %arg0, %c0_i32, %c0_i32_0, %c0_i32_1 : i32, i32, i32, i32
  }
}

</mosaic_0001>

<llo_original>
// kernel: tpu_custom_call.1
$region0: #{tpu_custom_call.1}
  #allocation0 [shape = 'u32[]', space=smem, size = 0x4, offset = 0x4, fixed_abs, tag = 'smem constant byte address 0x4 - core index']
  #allocation1 [shape = 'u32[144,128]{1,0:T(1,128)}', space=vmem, size = 0x12000, scoped, tag = 'internal scratch']
  #allocation2 [shape = 'f32[4,18,18]{2,1,0:T(8,128)}', space=vmem, size = 0xc000, scoped, tag = 'scratch operand']
  #allocation3 [shape = 'f32[1]{0:T(128)S(6)}', space=smem, size = 0x200, scoped, tag = 'scoped memory for tpu_custom_call.1']
  %s0 = inlined_call_operand.vmem [shape: f32[36], index: 0, kind: input, shape index: {}]
  %s1 = inlined_call_operand.<no memory space> [shape: f32[1], index: 1, kind: input, shape index: {}]
  %s2 = inlined_call_operand.hbm [shape: f32[2,4,16,16], index: 2, kind: input, shape index: {}]
  %s3 = inlined_call_operand.hbm [shape: f32[2,1,16,16], index: 3, kind: output, shape index: {}]
  %s4 = sld [smem:[#allocation0]]
  $region53: #{tpu_custom_call.1} parent=0
    _
  %s6 = ssub.s32 1, %s4
  %s7 = scalar_select 0, %s6, %s4
  %8 = sst [smem:[#allocation3]] %s1
  $region1: #{tpu_custom_call.1} parent=0
    #allocation4 [shape = 'u8[512]{0}', space=smem, size = 0x200, scoped, tag = 'input window, operand 0, single buffered']
    #allocation5 [shape = 's32[2]{0}', space=sflag, size = 0x8, scoped, tag = 'scoped memory for tpu_custom_call.1']
    #allocation6 [shape = 's32[2]{0}', space=sflag, size = 0x8, scoped, tag = 'scoped memory for tpu_custom_call.1']
    #allocation7 [shape = 's32[2]{0}', space=sflag, size = 0x8, scoped, tag = 'scoped memory for tpu_custom_call.1']
    #allocation8 [shape = 'u8[65536]{0}', space=vmem, size = 0x10000, scoped, tag = 'input window, operand 2']
    #allocation9 [shape = 'u8[16384]{0}', space=vmem, size = 0x4000, scoped, tag = 'output window, operand 0']
    %9 = vsyncpa [#allocation7], 0
    %10 = vsyncpa [#allocation5], 0
    %s11 = scalar_lea.sflag [#allocation5], 1
    %12 = vsyncpa %s11, 0
    %13 = vsyncpa [#allocation6], 0
    %s14 = scalar_lea.sflag [#allocation6], 1
    %15 = vsyncpa %s14, 0
    loop: start=0, step=1, limit=4
    $region2: #{tpu_custom_call.1} parent=1 // loop_pre_header
      _
    $region3: #{tpu_custom_call.1} parent=1 // loop_header
      %s17 = sphi 0, %s21
      %p18 = scmp.ge.s32.totalorder %s17, 4
      %s25 = sphi 0, %s25
      %s27 = sphi 0, %s25
      %s28 = sphi 0, %s27
      %s42 = sphi 0, %s28
      %s46 = sphi 0, %s46
      %s48 = sphi 0, %s46
      %s49 = sphi 0, %s48
      %s63 = sphi 0, %s49
      %s69 = sphi 0, %s71
      %s72 = sphi 0, %s69
      %s73 = sphi 0, %s72
      %s89 = sphi 0, %s73
      %s95 = sphi 0, %s97
      %s98 = sphi 0, %s95
      %s99 = sphi 0, %s98
      %s115 = sphi 0, %s99
    $region4: #{tpu_custom_call.1} parent=1 // loop_header_branch
      %20 = sbr.rel (%p18) target = $region8
    $region5: #{tpu_custom_call.1} parent=1 // loop_body
      %s22 = ssub.s32 %s17, 1
      %s23 = ssub.s32 %s17, 2
      %s24 = sadd.s32 %s17, 1
      %s26 = sadd.s32 %s25, 1
      %p29 = scmp.eq.s32.totalorder %s17, 1
      %p30 = scmp.ne.s32.totalorder %s25, %s27
      %p31 = scmp.eq.s32.totalorder %s17, 0
      %p32 = por %p30, %p31
      %p33 = scmp.ne.s32.totalorder %s25, %s27
      %p34 = scmp.eq.s32.totalorder %s22, 1
      %p35 = por %p33, %p34
      %p36 = scmp.ne.s32.totalorder %s27, %s28
      %p37 = scmp.eq.s32.totalorder %s22, 0
      %p38 = por %p36, %p37
      %p39 = scmp.ne.s32.totalorder %s27, %s28
      %p40 = scmp.eq.s32.totalorder %s23, 1
      %p41 = por %p39, %p40
      %p43 = scmp.ne.s32.totalorder %s28, %s42
      %p44 = scmp.eq.s32.totalorder %s23, 0
      %p45 = por %p43, %p44
      %s47 = sadd.s32 %s46, 1
      %p50 = scmp.eq.s32.totalorder %s17, 1
      %p51 = scmp.ne.s32.totalorder %s46, %s48
      %p52 = scmp.eq.s32.totalorder %s17, 0
      %p53 = por %p51, %p52
      %p54 = scmp.ne.s32.totalorder %s46, %s48
      %p55 = scmp.eq.s32.totalorder %s22, 1
      %p56 = por %p54, %p55
      %p57 = scmp.ne.s32.totalorder %s48, %s49
      %p58 = scmp.eq.s32.totalorder %s22, 0
      %p59 = por %p57, %p58
      %p60 = scmp.ne.s32.totalorder %s48, %s49
      %p61 = scmp.eq.s32.totalorder %s23, 1
      %p62 = por %p60, %p61
      %p64 = scmp.ne.s32.totalorder %s49, %s63
      %p65 = scmp.eq.s32.totalorder %s23, 0
      %p66 = por %p64, %p65
      %s67 = ssub.s32 %s17, %s24
      %p68 = scmp.eq.s32.totalorder %s67, 0
      %s70 = sadd.s32 %s69, 1
      %s71 = scalar_select %p68, %s69, %s70
      %p74 = pneg %p68
      %p75 = scmp.eq.s32.totalorder %s17, 1
      %p76 = por %p74, %p75
      %p77 = scmp.ne.s32.totalorder %s69, %s72
      %p78 = scmp.eq.s32.totalorder %s17, 0
      %p79 = por %p77, %p78
      %p80 = scmp.ne.s32.totalorder %s69, %s72
      %p81 = scmp.eq.s32.totalorder %s22, 1
      %p82 = por %p80, %p81
      %p83 = scmp.ne.s32.totalorder %s72, %s73
      %p84 = scmp.eq.s32.totalorder %s22, 0
      %p85 = por %p83, %p84
      %p86 = scmp.ne.s32.totalorder %s72, %s73
      %p87 = scmp.eq.s32.totalorder %s23, 1
      %p88 = por %p86, %p87
      %p90 = scmp.ne.s32.totalorder %s73, %s89
      %p91 = scmp.eq.s32.totalorder %s23, 0
      %p92 = por %p90, %p91
      %s93 = ssub.s32 %s17, %s24
      %p94 = scmp.eq.s32.totalorder %s93, 0
      %s96 = sadd.s32 %s95, 1
      %s97 = scalar_select %p94, %s95, %s96
      %p100 = pneg %p94
      %p101 = scmp.eq.s32.totalorder %s17, 1
      %p102 = por %p100, %p101
      %p103 = scmp.ne.s32.totalorder %s95, %s98
      %p104 = scmp.eq.s32.totalorder %s17, 0
      %p105 = por %p103, %p104
      %p106 = scmp.ne.s32.totalorder %s95, %s98
      %p107 = scmp.eq.s32.totalorder %s22, 1
      %p108 = por %p106, %p107
      %p109 = scmp.ne.s32.totalorder %s98, %s99
      %p110 = scmp.eq.s32.totalorder %s22, 0
      %p111 = por %p109, %p110
      %p112 = scmp.ne.s32.totalorder %s98, %s99
      %p113 = scmp.eq.s32.totalorder %s23, 1
      %p114 = por %p112, %p113
      %p116 = scmp.ne.s32.totalorder %s99, %s115
      %p117 = scmp.eq.s32.totalorder %s23, 0
      %p118 = por %p116, %p117
      %p119 = scmp.le.s32.totalorder 1, %s17
      %p120 = scmp.lt.s32.totalorder %s17, 3
      %p121 = pnand %p119, %p120
      %p122 = pneg %p121
      // Predicated region
      $region9: #{tpu_custom_call.1} parent=5 // pred_check
        _
      $region10: #{tpu_custom_call.1} parent=5 // pred_check_branch
        %124 = sbr.rel (%p121) target = $region12
      $region11: #{tpu_custom_call.1} parent=5 // pred_region
        %s125 = ssub.s32 %s17, 1
        // Predicated region
        $region13: #{tpu_custom_call.1} parent=11 // pred_check
          %p126 = pneg %p38
        $region14: #{tpu_custom_call.1} parent=11 // pred_check_branch
          %128 = sbr.rel (%p126) target = $region16
        $region15: #{tpu_custom_call.1} parent=11 // pred_region
          %s130 = ssub.s32 16, 16
          %131 = vsyncadd [#allocation7], %s130
          %s133 = sshll.u32 %s0, 4
          %s134 = int_to_ptr.vmem [resolvable:$true] %s133
          %136 = dma.vmem_to_smem %s134, 16, [#allocation4], [#allocation7]
        $region16: #{tpu_custom_call.1} parent=11 // pred_fallthru
          _
        // Predicated region
        $region17: #{tpu_custom_call.1} parent=11 // pred_check
          %p137 = pneg %p59
        $region18: #{tpu_custom_call.1} parent=11 // pred_check_branch
          %139 = sbr.rel (%p137) target = $region20
        $region19: #{tpu_custom_call.1} parent=11 // pred_region
          _
        $region20: #{tpu_custom_call.1} parent=11 // pred_fallthru
          _
      $region12: #{tpu_custom_call.1} parent=5 // pred_fallthru
        _
      %p140 = scmp.lt.s32.totalorder %s17, 2
      // Predicated region
      $region21: #{tpu_custom_call.1} parent=5 // pred_check
        %p141 = pneg %p140
      $region22: #{tpu_custom_call.1} parent=5 // pred_check_branch
        %143 = sbr.rel (%p141) target = $region24
      $region23: #{tpu_custom_call.1} parent=5 // pred_region
        // Predicated region
        $region25: #{tpu_custom_call.1} parent=23 // pred_check
          %p144 = pneg %p79
        $region26: #{tpu_custom_call.1} parent=23 // pred_check_branch
          %146 = sbr.rel (%p144) target = $region28
        $region27: #{tpu_custom_call.1} parent=23 // pred_region
          %s147 = sand.u32 %s69, 1
          %s148 = scalar_lea.sflag [#allocation5], %s147
          %s149 = sand.u32 %s69, 1
          %s150 = smul.addr %s149, 64
          %s151 = scalar_lea.vmem [#allocation8], %s150
          %s153 = ssub.s32 1024, 1024
          %154 = vsyncadd %s148, %s153
          %s155 = smul.addr %s17, 8
          %s156 = smul.addr %s155, 128
          %s157 = scalar_lea.hbm %s2, %s156
          %s158 = sshll.u32 %s151, 4
          %s159 = int_to_ptr.vmem [resolvable:$true] %s158
          %164 = dma.hbm_to_vmem [thread:$0]  %s157, 1024, %s159, %s148, 128, 128, 8
        $region28: #{tpu_custom_call.1} parent=23 // pred_fallthru
          _
      $region24: #{tpu_custom_call.1} parent=5 // pred_fallthru
        _
      %p165 = scmp.le.s32.totalorder 1, %s17
      %p166 = scmp.lt.s32.totalorder %s17, 3
      %p167 = pnand %p165, %p166
      %p168 = pneg %p167
      // Predicated region
      $region29: #{tpu_custom_call.1} parent=5 // pred_check
        _
      $region30: #{tpu_custom_call.1} parent=5 // pred_check_branch
        %170 = sbr.rel (%p167) target = $region32
      $region31: #{tpu_custom_call.1} parent=5 // pred_region
        %s171 = ssub.s32 %s17, 1
        // Predicated region
        $region33: #{tpu_custom_call.1} parent=31 // pred_check
          %p172 = pneg %p38
        $region34: #{tpu_custom_call.1} parent=31 // pred_check_branch
          %174 = sbr.rel (%p172) target = $region36
        $region35: #{tpu_custom_call.1} parent=31 // pred_region
          %175 = dma.done [#allocation7], 16
        $region36: #{tpu_custom_call.1} parent=31 // pred_fallthru
          _
        %s176 = sand.u32 %s72, 1
        %s177 = scalar_lea.sflag [#allocation5], %s176
        %s178 = sand.u32 %s72, 1
        %s179 = smul.addr %s178, 64
        %s180 = scalar_lea.vmem [#allocation8], %s179
        // Predicated region
        $region37: #{tpu_custom_call.1} parent=31 // pred_check
          %p181 = pneg %p85
        $region38: #{tpu_custom_call.1} parent=31 // pred_check_branch
          %183 = sbr.rel (%p181) target = $region40
        $region39: #{tpu_custom_call.1} parent=31 // pred_region
          %184 = dma.done %s177, 1024
        $region40: #{tpu_custom_call.1} parent=31 // pred_fallthru
          _
        %185 = sfence
        %p186 = pneg %p38
        %p187 = pneg %p35
        %p188 = pneg %p59
        %p189 = pneg %p56
        %s190 = sand.u32 %s72, 1
        %s191 = scalar_lea.sflag [#allocation5], %s190
        %s192 = sand.u32 %s72, 1
        %s193 = smul.addr %s192, 64
        %s194 = scalar_lea.vmem [#allocation8], %s193
        %p195 = pneg %p85
        %p196 = pneg %p82
        %p197 = pneg %p111
        %p198 = pneg %p108
        %s199 = sand.u32 %s98, 1
        %s200 = scalar_lea.sflag [#allocation6], %s199
        %s201 = sand.u32 %s98, 1
        %s202 = smul.addr %s201, 16
        %s203 = scalar_lea.vmem [#allocation9], %s202
        %vm204 = vcmask 146432
        %205 = vst.msk [vmem:[#allocation2] sm:$0xff] %vm204, 0.0
        %206 = vst.msk [vmem:[#allocation2 + $0x8] sm:$0xff] %vm204, 0.0
        %vm207 = vcmask 140288
        %208 = vst.msk [vmem:[#allocation2 + $0x10] sm:$0x3] %vm207, 0.0
        %209 = vst.msk [vmem:[#allocation2 + $0x18] sm:$0xff] %vm204, 0.0
        %210 = vst.msk [vmem:[#allocation2 + $0x20] sm:$0xff] %vm204, 0.0
        %211 = vst.msk [vmem:[#allocation2 + $0x28] sm:$0x3] %vm207, 0.0
        %212 = vst.msk [vmem:[#allocation2 + $0x30] sm:$0xff] %vm204, 0.0
        %213 = vst.msk [vmem:[#allocation2 + $0x38] sm:$0xff] %vm204, 0.0
        %214 = vst.msk [vmem:[#allocation2 + $0x40] sm:$0x3] %vm207, 0.0
        %215 = vst.msk [vmem:[#allocation2 + $0x48] sm:$0xff] %vm204, 0.0
        %216 = vst.msk [vmem:[#allocation2 + $0x50] sm:$0xff] %vm204, 0.0
        %217 = vst.msk [vmem:[#allocation2 + $0x58] sm:$0x3] %vm207, 0.0
        %v218 = vld [vmem:[%s180] sm:$0xff]
        %v219 = vld [vmem:[%s180 + $0x8] sm:$0xff]
        %v220 = vld [vmem:[%s180 + $0x10] sm:$0xff]
        %v221 = vld [vmem:[%s180 + $0x18] sm:$0xff]
        %v222 = vld [vmem:[%s180 + $0x20] sm:$0xff]
        %v223 = vld [vmem:[%s180 + $0x28] sm:$0xff]
        %v224 = vld [vmem:[%s180 + $0x30] sm:$0xff]
        %v225 = vld [vmem:[%s180 + $0x38] sm:$0xff]
        %234 = vrot.lane.b32.xlu0 %v218, 1
        %v235 = vpop.permute.xlu0 %234
        %236 = vrot.lane.b32.xlu0 %v219, 1
        %v237 = vpop.permute.xlu0 %236
        %238 = vrot.lane.b32.xlu0 %v220, 1
        %v239 = vpop.permute.xlu0 %238
        %240 = vrot.lane.b32.xlu0 %v221, 1
        %v241 = vpop.permute.xlu0 %240
        %242 = vrot.lane.b32.xlu0 %v222, 1
        %v243 = vpop.permute.xlu0 %242
        %244 = vrot.lane.b32.xlu0 %v223, 1
        %v245 = vpop.permute.xlu0 %244
        %246 = vrot.lane.b32.xlu0 %v224, 1
        %v247 = vpop.permute.xlu0 %246
        %248 = vrot.lane.b32.xlu0 %v225, 1
        %v249 = vpop.permute.xlu0 %248
        %vm258 = vcmask 138248
        %259 = vst.msk [vmem:[#allocation2 + $0x1] sm:$0xff] %vm258, %v235
        %260 = vst.msk [vmem:[#allocation2 + $0x9] sm:$0xff] %vm258, %v237
        %261 = vst.msk [vmem:[#allocation2 + $0x19] sm:$0xff] %vm258, %v239
        %262 = vst.msk [vmem:[#allocation2 + $0x21] sm:$0xff] %vm258, %v241
        %263 = vst.msk [vmem:[#allocation2 + $0x31] sm:$0xff] %vm258, %v243
        %264 = vst.msk [vmem:[#allocation2 + $0x39] sm:$0xff] %vm258, %v245
        %265 = vst.msk [vmem:[#allocation2 + $0x49] sm:$0xff] %vm258, %v247
        %266 = vst.msk [vmem:[#allocation2 + $0x51] sm:$0xff] %vm258, %v249
        %s267 = sld [smem:[#allocation3]]
        %v268 = vstv %s267
        %s269 = sld [smem:[#allocation4]]
        %v270 = vld [vmem:[#allocation2] sm:$0xff]
        %v271 = vld [vmem:[#allocation2 + $0x8] sm:$0xff]
        %v272 = vstv %s269
        %v273 = vmul.f32 %v270, %v272
        %v274 = vmul.f32 %v271, %v272
        %v275 = vadd.f32 %v268, %v273
        %v276 = vadd.f32 %v268, %v274
        %s277 = sld [smem:[#allocation4 + $0x1]]
        %v278 = vstv %s277
        %v279 = vmul.f32 %v270, %v278
        %v280 = vmul.f32 %v271, %v278
        %283 = vrot.lane.b32.xlu0 %v279, 127
        %v284 = vpop.permute.xlu0 %283
        %285 = vrot.lane.b32.xlu0 %v280, 127
        %v286 = vpop.permute.xlu0 %285
        %v289 = vadd.f32 %v275, %v284
        %v290 = vadd.f32 %v276, %v286
        %s291 = sld [smem:[#allocation4 + $0x2]]
        %v292 = vstv %s291
        %v293 = vmul.f32 %v270, %v292
        %v294 = vmul.f32 %v271, %v292
        %297 = vrot.lane.b32.xlu0 %v293, 126
        %v298 = vpop.permute.xlu0 %297
        %299 = vrot.lane.b32.xlu0 %v294, 126
        %v300 = vpop.permute.xlu0 %299
        %v303 = vadd.f32 %v289, %v298
        %v304 = vadd.f32 %v290, %v300
        %s305 = sld [smem:[#allocation4 + $0x3]]
        %v306 = vld [vmem:[#allocation2 + $0x1] sm:$0xff]
        %v307 = vld [vmem:[#allocation2 + $0x9] sm:$0xff]
        %v308 = vstv %s305
        %v309 = vmul.f32 %v306, %v308
        %v310 = vmul.f32 %v307, %v308
        %v311 = vadd.f32 %v303, %v309
        %v312 = vadd.f32 %v304, %v310
        %s313 = sld [smem:[#allocation4 + $0x4]]
        %v314 = vstv %s313
        %v315 = vmul.f32 %v306, %v314
        %v316 = vmul.f32 %v307, %v314
        %319 = vrot.lane.b32.xlu0 %v315, 127
        %v320 = vpop.permute.xlu0 %319
        %321 = vrot.lane.b32.xlu0 %v316, 127
        %v322 = vpop.permute.xlu0 %321
        %v325 = vadd.f32 %v311, %v320
        %v326 = vadd.f32 %v312, %v322
        %s327 = sld [smem:[#allocation4 + $0x5]]
        %v328 = vstv %s327
        %v329 = vmul.f32 %v306, %v328
        %v330 = vmul.f32 %v307, %v328
        %333 = vrot.lane.b32.xlu0 %v329, 126
        %v334 = vpop.permute.xlu0 %333
        %335 = vrot.lane.b32.xlu0 %v330, 126
        %v336 = vpop.permute.xlu0 %335
        %v339 = vadd.f32 %v325, %v334
        %v340 = vadd.f32 %v326, %v336
        %s341 = sld [smem:[#allocation4 + $0x6]]
        %v342 = vld [vmem:[#allocation2 + $0x2] sm:$0xff]
        %v343 = vld [vmem:[#allocation2 + $0xa] sm:$0xff]
        %v344 = vstv %s341
        %v345 = vmul.f32 %v342, %v344
        %v346 = vmul.f32 %v343, %v344
        %v347 = vadd.f32 %v339, %v345
        %v348 = vadd.f32 %v340, %v346
        %s349 = sld [smem:[#allocation4 + $0x7]]
        %v350 = vstv %s349
        %v351 = vmul.f32 %v342, %v350
        %v352 = vmul.f32 %v343, %v350
        %355 = vrot.lane.b32.xlu0 %v351, 127
        %v356 = vpop.permute.xlu0 %355
        %357 = vrot.lane.b32.xlu0 %v352, 127
        %v358 = vpop.permute.xlu0 %357
        %v361 = vadd.f32 %v347, %v356
        %v362 = vadd.f32 %v348, %v358
        %s363 = sld [smem:[#allocation4 + $0x8]]
        %v364 = vstv %s363
        %v365 = vmul.f32 %v342, %v364
        %v366 = vmul.f32 %v343, %v364
        %369 = vrot.lane.b32.xlu0 %v365, 126
        %v370 = vpop.permute.xlu0 %369
        %371 = vrot.lane.b32.xlu0 %v366, 126
        %v372 = vpop.permute.xlu0 %371
        %v375 = vadd.f32 %v361, %v370
        %v376 = vadd.f32 %v362, %v372
        %s377 = sld [smem:[#allocation4 + $0x9]]
        %s378 = scalar_lea.vmem [#allocation2], 24
        %v379 = vld [vmem:[%s378] sm:$0xff]
        %v380 = vld [vmem:[%s378 + $0x8] sm:$0xff]
        %v381 = vstv %s377
        %v382 = vmul.f32 %v379, %v381
        %v383 = vmul.f32 %v380, %v381
        %v384 = vadd.f32 %v375, %v382
        %v385 = vadd.f32 %v376, %v383
        %s386 = sld [smem:[#allocation4 + $0xa]]
        %v387 = vstv %s386
        %v388 = vmul.f32 %v379, %v387
        %v389 = vmul.f32 %v380, %v387
        %392 = vrot.lane.b32.xlu0 %v388, 127
        %v393 = vpop.permute.xlu0 %392
        %394 = vrot.lane.b32.xlu0 %v389, 127
        %v395 = vpop.permute.xlu0 %394
        %v398 = vadd.f32 %v384, %v393
        %v399 = vadd.f32 %v385, %v395
        %s400 = sld [smem:[#allocation4 + $0xb]]
        %v401 = vstv %s400
        %v402 = vmul.f32 %v379, %v401
        %v403 = vmul.f32 %v380, %v401
        %406 = vrot.lane.b32.xlu0 %v402, 126
        %v407 = vpop.permute.xlu0 %406
        %408 = vrot.lane.b32.xlu0 %v403, 126
        %v409 = vpop.permute.xlu0 %408
        %v412 = vadd.f32 %v398, %v407
        %v413 = vadd.f32 %v399, %v409
        %s414 = sld [smem:[#allocation4 + $0xc]]
        %v415 = vld [vmem:[%s378 + $0x1] sm:$0xff]
        %v416 = vld [vmem:[%s378 + $0x9] sm:$0xff]
        %v417 = vstv %s414
        %v418 = vmul.f32 %v415, %v417
        %v419 = vmul.f32 %v416, %v417
        %v420 = vadd.f32 %v412, %v418
        %v421 = vadd.f32 %v413, %v419
        %s422 = sld [smem:[#allocation4 + $0xd]]
        %v423 = vstv %s422
        %v424 = vmul.f32 %v415, %v423
        %v425 = vmul.f32 %v416, %v423
        %428 = vrot.lane.b32.xlu0 %v424, 127
        %v429 = vpop.permute.xlu0 %428
        %430 = vrot.lane.b32.xlu0 %v425, 127
        %v431 = vpop.permute.xlu0 %430
        %v434 = vadd.f32 %v420, %v429
        %v435 = vadd.f32 %v421, %v431
        %s436 = sld [smem:[#allocation4 + $0xe]]
        %v437 = vstv %s436
        %v438 = vmul.f32 %v415, %v437
        %v439 = vmul.f32 %v416, %v437
        %442 = vrot.lane.b32.xlu0 %v438, 126
        %v443 = vpop.permute.xlu0 %442
        %444 = vrot.lane.b32.xlu0 %v439, 126
        %v445 = vpop.permute.xlu0 %444
        %v448 = vadd.f32 %v434, %v443
        %v449 = vadd.f32 %v435, %v445
        %s450 = sld [smem:[#allocation4 + $0xf]]
        %v451 = vld [vmem:[%s378 + $0x2] sm:$0xff]
        %v452 = vld [vmem:[%s378 + $0xa] sm:$0xff]
        %v453 = vstv %s450
        %v454 = vmul.f32 %v451, %v453
        %v455 = vmul.f32 %v452, %v453
        %v456 = vadd.f32 %v448, %v454
        %v457 = vadd.f32 %v449, %v455
        %s458 = sld [smem:[#allocation4 + $0x10]]
        %v459 = vstv %s458
        %v460 = vmul.f32 %v451, %v459
        %v461 = vmul.f32 %v452, %v459
        %464 = vrot.lane.b32.xlu0 %v460, 127
        %v465 = vpop.permute.xlu0 %464
        %466 = vrot.lane.b32.xlu0 %v461, 127
        %v467 = vpop.permute.xlu0 %466
        %v470 = vadd.f32 %v456, %v465
        %v471 = vadd.f32 %v457, %v467
        %s472 = sld [smem:[#allocation4 + $0x11]]
        %v473 = vstv %s472
        %v474 = vmul.f32 %v451, %v473
        %v475 = vmul.f32 %v452, %v473
        %478 = vrot.lane.b32.xlu0 %v474, 126
        %v479 = vpop.permute.xlu0 %478
        %480 = vrot.lane.b32.xlu0 %v475, 126
        %v481 = vpop.permute.xlu0 %480
        %v484 = vadd.f32 %v470, %v479
        %v485 = vadd.f32 %v471, %v481
        %s486 = sld [smem:[#allocation4 + $0x12]]
        %s487 = scalar_lea.vmem [#allocation2], 48
        %v488 = vld [vmem:[%s487] sm:$0xff]
        %v489 = vld [vmem:[%s487 + $0x8] sm:$0xff]
        %v490 = vstv %s486
        %v491 = vmul.f32 %v488, %v490
        %v492 = vmul.f32 %v489, %v490
        %v493 = vadd.f32 %v484, %v491
        %v494 = vadd.f32 %v485, %v492
        %s495 = sld [smem:[#allocation4 + $0x13]]
        %v496 = vstv %s495
        %v497 = vmul.f32 %v488, %v496
        %v498 = vmul.f32 %v489, %v496
        %501 = vrot.lane.b32.xlu0 %v497, 127
        %v502 = vpop.permute.xlu0 %501
        %503 = vrot.lane.b32.xlu0 %v498, 127
        %v504 = vpop.permute.xlu0 %503
        %v507 = vadd.f32 %v493, %v502
        %v508 = vadd.f32 %v494, %v504
        %s509 = sld [smem:[#allocation4 + $0x14]]
        %v510 = vstv %s509
        %v511 = vmul.f32 %v488, %v510
        %v512 = vmul.f32 %v489, %v510
        %515 = vrot.lane.b32.xlu0 %v511, 126
        %v516 = vpop.permute.xlu0 %515
        %517 = vrot.lane.b32.xlu0 %v512, 126
        %v518 = vpop.permute.xlu0 %517
        %v521 = vadd.f32 %v507, %v516
        %v522 = vadd.f32 %v508, %v518
        %s523 = sld [smem:[#allocation4 + $0x15]]
        %v524 = vld [vmem:[%s487 + $0x1] sm:$0xff]
        %v525 = vld [vmem:[%s487 + $0x9] sm:$0xff]
        %v526 = vstv %s523
        %v527 = vmul.f32 %v524, %v526
        %v528 = vmul.f32 %v525, %v526
        %v529 = vadd.f32 %v521, %v527
        %v530 = vadd.f32 %v522, %v528
        %s531 = sld [smem:[#allocation4 + $0x16]]
        %v532 = vstv %s531
        %v533 = vmul.f32 %v524, %v532
        %v534 = vmul.f32 %v525, %v532
        %537 = vrot.lane.b32.xlu0 %v533, 127
        %v538 = vpop.permute.xlu0 %537
        %539 = vrot.lane.b32.xlu0 %v534, 127
        %v540 = vpop.permute.xlu0 %539
        %v543 = vadd.f32 %v529, %v538
        %v544 = vadd.f32 %v530, %v540
        %s545 = sld [smem:[#allocation4 + $0x17]]
        %v546 = vstv %s545
        %v547 = vmul.f32 %v524, %v546
        %v548 = vmul.f32 %v525, %v546
        %551 = vrot.lane.b32.xlu0 %v547, 126
        %v552 = vpop.permute.xlu0 %551
        %553 = vrot.lane.b32.xlu0 %v548, 126
        %v554 = vpop.permute.xlu0 %553
        %v557 = vadd.f32 %v543, %v552
        %v558 = vadd.f32 %v544, %v554
        %s559 = sld [smem:[#allocation4 + $0x18]]
        %v560 = vld [vmem:[%s487 + $0x2] sm:$0xff]
        %v561 = vld [vmem:[%s487 + $0xa] sm:$0xff]
        %v562 = vstv %s559
        %v563 = vmul.f32 %v560, %v562
        %v564 = vmul.f32 %v561, %v562
        %v565 = vadd.f32 %v557, %v563
        %v566 = vadd.f32 %v558, %v564
        %s567 = sld [smem:[#allocation4 + $0x19]]
        %v568 = vstv %s567
        %v569 = vmul.f32 %v560, %v568
        %v570 = vmul.f32 %v561, %v568
        %573 = vrot.lane.b32.xlu0 %v569, 127
        %v574 = vpop.permute.xlu0 %573
        %575 = vrot.lane.b32.xlu0 %v570, 127
        %v576 = vpop.permute.xlu0 %575
        %v579 = vadd.f32 %v565, %v574
        %v580 = vadd.f32 %v566, %v576
        %s581 = sld [smem:[#allocation4 + $0x1a]]
        %v582 = vstv %s581
        %v583 = vmul.f32 %v560, %v582
        %v584 = vmul.f32 %v561, %v582
        %587 = vrot.lane.b32.xlu0 %v583, 126
        %v588 = vpop.permute.xlu0 %587
        %589 = vrot.lane.b32.xlu0 %v584, 126
        %v590 = vpop.permute.xlu0 %589
        %v593 = vadd.f32 %v579, %v588
        %v594 = vadd.f32 %v580, %v590
        %s595 = sld [smem:[#allocation4 + $0x1b]]
        %s596 = scalar_lea.vmem [#allocation2], 72
        %v597 = vld [vmem:[%s596] sm:$0xff]
        %v598 = vld [vmem:[%s596 + $0x8] sm:$0xff]
        %v599 = vstv %s595
        %v600 = vmul.f32 %v597, %v599
        %v601 = vmul.f32 %v598, %v599
        %v602 = vadd.f32 %v593, %v600
        %v603 = vadd.f32 %v594, %v601
        %s604 = sld [smem:[#allocation4 + $0x1c]]
        %v605 = vstv %s604
        %v606 = vmul.f32 %v597, %v605
        %v607 = vmul.f32 %v598, %v605
        %610 = vrot.lane.b32.xlu0 %v606, 127
        %v611 = vpop.permute.xlu0 %610
        %612 = vrot.lane.b32.xlu0 %v607, 127
        %v613 = vpop.permute.xlu0 %612
        %v616 = vadd.f32 %v602, %v611
        %v617 = vadd.f32 %v603, %v613
        %s618 = sld [smem:[#allocation4 + $0x1d]]
        %v619 = vstv %s618
        %v620 = vmul.f32 %v597, %v619
        %v621 = vmul.f32 %v598, %v619
        %624 = vrot.lane.b32.xlu0 %v620, 126
        %v625 = vpop.permute.xlu0 %624
        %626 = vrot.lane.b32.xlu0 %v621, 126
        %v627 = vpop.permute.xlu0 %626
        %v630 = vadd.f32 %v616, %v625
        %v631 = vadd.f32 %v617, %v627
        %s632 = sld [smem:[#allocation4 + $0x1e]]
        %v633 = vld [vmem:[%s596 + $0x1] sm:$0xff]
        %v634 = vld [vmem:[%s596 + $0x9] sm:$0xff]
        %v635 = vstv %s632
        %v636 = vmul.f32 %v633, %v635
        %v637 = vmul.f32 %v634, %v635
        %v638 = vadd.f32 %v630, %v636
        %v639 = vadd.f32 %v631, %v637
        %s640 = sld [smem:[#allocation4 + $0x1f]]
        %v641 = vstv %s640
        %v642 = vmul.f32 %v633, %v641
        %v643 = vmul.f32 %v634, %v641
        %646 = vrot.lane.b32.xlu0 %v642, 127
        %v647 = vpop.permute.xlu0 %646
        %648 = vrot.lane.b32.xlu0 %v643, 127
        %v649 = vpop.permute.xlu0 %648
        %v652 = vadd.f32 %v638, %v647
        %v653 = vadd.f32 %v639, %v649
        %s654 = sld [smem:[#allocation4 + $0x20]]
        %v655 = vstv %s654
        %v656 = vmul.f32 %v633, %v655
        %v657 = vmul.f32 %v634, %v655
        %660 = vrot.lane.b32.xlu0 %v656, 126
        %v661 = vpop.permute.xlu0 %660
        %662 = vrot.lane.b32.xlu0 %v657, 126
        %v663 = vpop.permute.xlu0 %662
        %v666 = vadd.f32 %v652, %v661
        %v667 = vadd.f32 %v653, %v663
        %s668 = sld [smem:[#allocation4 + $0x21]]
        %v669 = vld [vmem:[%s596 + $0x2] sm:$0xff]
        %v670 = vld [vmem:[%s596 + $0xa] sm:$0xff]
        %v671 = vstv %s668
        %v672 = vmul.f32 %v669, %v671
        %v673 = vmul.f32 %v670, %v671
        %v674 = vadd.f32 %v666, %v672
        %v675 = vadd.f32 %v667, %v673
        %s676 = sld [smem:[#allocation4 + $0x22]]
        %v677 = vstv %s676
        %v678 = vmul.f32 %v669, %v677
        %v679 = vmul.f32 %v670, %v677
        %682 = vrot.lane.b32.xlu0 %v678, 127
        %v683 = vpop.permute.xlu0 %682
        %684 = vrot.lane.b32.xlu0 %v679, 127
        %v685 = vpop.permute.xlu0 %684
        %v688 = vadd.f32 %v674, %v683
        %v689 = vadd.f32 %v675, %v685
        %s690 = sld [smem:[#allocation4 + $0x23]]
        %v691 = vstv %s690
        %v692 = vmul.f32 %v669, %v691
        %v693 = vmul.f32 %v670, %v691
        %696 = vrot.lane.b32.xlu0 %v692, 126
        %v697 = vpop.permute.xlu0 %696
        %698 = vrot.lane.b32.xlu0 %v693, 126
        %v699 = vpop.permute.xlu0 %698
        %v702 = vadd.f32 %v688, %v697
        %v703 = vadd.f32 %v689, %v699
        %v704 = vxor.u32 %v702, 2147483648
        %v705 = vxor.u32 %v703, 2147483648
        %v706 = vmul.f32 %v704, 1.442695
        %v707 = vpow.pop %v706
        %v708 = vmul.f32 %v705, 1.442695
        %v709 = vpow.pop %v708
        %v710 = vadd.f32 %v707, 1.0
        %v711 = vadd.f32 %v709, 1.0
        %v712 = vrcp.pop %v710
        %v713 = vmul.f32 1.0, %v712
        %v714 = vrcp.pop %v711
        %v715 = vmul.f32 1.0, %v714
        %v716 = vmul.f32 %v713, 9.99
        %v717 = vmul.f32 %v715, 9.99
        %v718 = vadd.f32 %v716, 0.01
        %v719 = vadd.f32 %v717, 0.01
        %vm720 = vcmask 130048
        %721 = vst.msk [vmem:[%s203] sm:$0xff] %vm720, %v718
        %722 = vst.msk [vmem:[%s203 + $0x8] sm:$0xff] %vm720, %v719
        %s723 = sand.u32 %s98, 1
        %s724 = scalar_lea.sflag [#allocation6], %s723
        %s725 = sand.u32 %s98, 1
        %s726 = smul.addr %s725, 16
        %s727 = scalar_lea.vmem [#allocation9], %s726
        // Predicated region
        $region41: #{tpu_custom_call.1} parent=31 // pred_check
          %p728 = pneg %p108
        $region42: #{tpu_custom_call.1} parent=31 // pred_check_branch
          %730 = sbr.rel (%p728) target = $region44
        $region43: #{tpu_custom_call.1} parent=31 // pred_region
          %s732 = ssub.s32 256, 256
          %733 = vsyncadd %s724, %s732
          %s734 = smul.addr %s22, 2
          %s735 = smul.addr %s734, 128
          %s736 = scalar_lea.hbm %s3, %s735
          %s737 = sshll.u32 %s727, 4
          %s738 = int_to_ptr.vmem [resolvable:$true] %s737
          %743 = dma.vmem_to_hbm [thread:$0]  %s738, 256, %s736, %s724, 128, 128, 8
        $region44: #{tpu_custom_call.1} parent=31 // pred_fallthru
          _
      $region32: #{tpu_custom_call.1} parent=5 // pred_fallthru
        _
      %p744 = scmp.le.s32.totalorder 2, %s17
      // Predicated region
      $region45: #{tpu_custom_call.1} parent=5 // pred_check
        %p745 = pneg %p744
      $region46: #{tpu_custom_call.1} parent=5 // pred_check_branch
        %747 = sbr.rel (%p745) target = $region48
      $region47: #{tpu_custom_call.1} parent=5 // pred_region
        %s748 = ssub.s32 %s17, 2
        // Predicated region
        $region49: #{tpu_custom_call.1} parent=47 // pred_check
          %p749 = pneg %p114
        $region50: #{tpu_custom_call.1} parent=47 // pred_check_branch
          %751 = sbr.rel (%p749) target = $region52
        $region51: #{tpu_custom_call.1} parent=47 // pred_region
          %s752 = sand.u32 %s99, 1
          %s753 = scalar_lea.sflag [#allocation6], %s752
          %s754 = sand.u32 %s99, 1
          %s755 = smul.addr %s754, 16
          %s756 = scalar_lea.vmem [#allocation9], %s755
          %757 = dma.done %s753, 256
        $region52: #{tpu_custom_call.1} parent=47 // pred_fallthru
          _
      $region48: #{tpu_custom_call.1} parent=5 // pred_fallthru
        _
    $region6: #{tpu_custom_call.1} parent=1 // loop_footer
      %s21 = sadd.s32 1, %s17
    $region7: #{tpu_custom_call.1} parent=1 // loop_footer_branch
      %16 = sbr.rel target = $region3
    $region8: #{tpu_custom_call.1} parent=1 // loop_exit
      _
    %758 = vsyncpa [#allocation5], 1
    %s759 = scalar_lea.sflag [#allocation5], 1
    %760 = vsyncpa %s759, 1
    %761 = vsyncpa [#allocation6], 1
    %s762 = scalar_lea.sflag [#allocation6], 1
    %763 = vsyncpa %s762, 1
    %764 = vsyncpa [#allocation7], 1
    %s765 = scalar_lea.sflag [#allocation7], 1
    %766 = vsyncpa %s765, 1

</llo_original>
